<compile_context>
chip_gen: v6e
topology: v6e:2x2x1
jax: 0.10.0
libtpu: 0.0.40
codegen_flags: <defaults>
</compile_context>

<pallas_src>
import functools

import jax
import jax.numpy as jnp
from jax.experimental import pallas as pl
from jax.experimental.pallas import tpu as pltpu


def attention_kernel(emb_ref, w_ref, out_ref, *, mxu_dtype):
    # emb_ref: (TB, N, D) block of batch elements
    # w_ref:   (D, D) shared weight (constant index_map -> resident across steps)
    # out_ref: (TB, D) output block (TB is a multiple of 8 -> sublane-dense store)
    e = emb_ref[...]                                        # (TB, N, D) f32
    w = w_ref[...]                                          # (D, D)

    # global_context = mean_n(e @ W) == mean_n(e) @ W  (linearity -> N x fewer FLOPs)
    e_mean = jnp.mean(e, axis=1)                            # (TB, D)  XLU sublane reduce
    global_context = jnp.dot(
        e_mean.astype(mxu_dtype), w.astype(mxu_dtype),
        preferred_element_type=jnp.float32)                 # (TB, D)  MXU
    transformed_global = jnp.tanh(global_context)           # (TB, D)  EUP

    # logits[b, n] = sum_d e[b, n, d] * tg[b, d]
    # VPU broadcast-mul + XLU reduce: avoids tiny >87%-padded per-batch MXU matmuls
    # and the MXU push/drain latency at small N, D. (Use MXU again only if D >= 128.)
    logits = jnp.sum(e * transformed_global[:, None, :], axis=-1)   # (TB, N)
    sigmoid_scores = jax.nn.sigmoid(logits)                          # (TB, N)  EUP

    # representation[b, d] = sum_n sigmoid_scores[b, n] * e[b, n, d]
    rep = jnp.sum(sigmoid_scores[..., None] * e, axis=1)             # (TB, D)

    out_ref[...] = rep.astype(out_ref.dtype)


def _pick_batch_tile(B, N, D, *, tb_cap=512, budget_bytes=12 * 1024 * 1024):
    """Largest multiple-of-8 batch tile whose double-buffered blocks fit `budget_bytes`.

    Budget is conservative so the double-buffered embedding + weight + output tiles
    stay well inside v7x's 64 MiB physical / 32 MiB default-scoped VMEM.
    """
    # per-row bytes, double-buffered: embedding row + output row (f32)
    per_row = 2 * (N * D * 4 + D * 4)
    tb_fit = max(8, (budget_bytes // max(per_row, 1)) // 8 * 8)
    tb = int(min(tb_cap, tb_fit))
    # If the whole (padded) batch fits in one tile, just use it.
    b_pad8 = ((B + 7) // 8) * 8
    if b_pad8 <= tb:
        return b_pad8
    return tb


def attention_module(embedding, weight_matrix):
    """Pallas implementation of AttentionModule.forward.

    embedding: (B, N, D) or (N, D) float32
    weight_matrix: (D, D) float32
    returns: (B, D) float32
    """
    if embedding.ndim == 2:
        embedding = embedding[None]
    B, N, D = embedding.shape

    TB = _pick_batch_tile(B, N, D)
    Bp = ((B + TB - 1) // TB) * TB
    if Bp != B:
        # Zero rows: sigmoid(0) * 0 == 0 -> exact-zero outputs, sliced off below.
        embedding = jnp.pad(embedding, ((0, Bp - B), (0, 0), (0, 0)))

    # bf16 on the MXU only once D is big enough to matter (v5e/v6e growth path);
    # f32 at small D keeps numerics tight vs. the f32 reference.
    mxu_dtype = jnp.bfloat16 if D >= 128 else jnp.float32

    # VMEM budget: double-buffered embedding block + weight + output block (+headroom).
    block_bytes = 2 * (TB * N * D * 4 + D * D * 4 + TB * D * 4)
    vmem_limit = int(min(48 * 1024 * 1024, max(4 * 1024 * 1024, 2 * block_bytes)))

    cost = pl.CostEstimate(
        flops=Bp * (2 * D * D + 5 * N * D),
        transcendentals=Bp * (D + N),
        bytes_accessed=(Bp * N * D + D * D + Bp * D) * 4,
    )

    out = pl.pallas_call(
        functools.partial(attention_kernel, mxu_dtype=mxu_dtype),
        out_shape=jax.ShapeDtypeStruct((Bp, D), embedding.dtype),
        grid_spec=pl.GridSpec(
            grid=(Bp // TB,),
            in_specs=[
                pl.BlockSpec((TB, N, D), lambda b: (b, 0, 0)),
                pl.BlockSpec((D, D), lambda b: (0, 0)),
            ],
            out_specs=pl.BlockSpec((TB, D), lambda b: (b, 0)),
        ),
        compiler_params=pltpu.CompilerParams(
            dimension_semantics=("parallel",),
            vmem_limit_bytes=vmem_limit,
        ),
        cost_estimate=cost,
    )(embedding, weight_matrix)
    return out[:B]


def reference(embedding, weight_matrix):
    if embedding.ndim == 2:
        embedding = embedding[None]
    gc = jnp.mean(jnp.matmul(embedding, weight_matrix[None]), axis=1, keepdims=True)
    tg = jnp.tanh(gc)
    scores = jax.nn.sigmoid(jnp.matmul(embedding, jnp.swapaxes(tg, 1, 2)))
    rep = jnp.matmul(jnp.swapaxes(embedding, 1, 2), scores)
    return rep[..., 0]


if __name__ == "__main__":
    key = jax.random.PRNGKey(0)
    k_emb, k_w = jax.random.split(key)

    B, N, D = 2, 8, 32  # batch, num_nodes, node_feature_dim

    embedding = jax.random.normal(k_emb, (B, N, D), dtype=jnp.float32)

    # Deterministic Xavier-uniform init for the (D, D) weight matrix.
    bound = (6.0 / (D + D)) ** 0.5
    weight_matrix = jax.random.uniform(
        k_w, (D, D), dtype=jnp.float32, minval=-bound, maxval=bound)

    out = attention_module(embedding, weight_matrix)
    out = jax.block_until_ready(out)

    ref = reference(embedding, weight_matrix)
    assert out.shape == (B, D)
    assert jnp.allclose(out, ref, atol=1e-4, rtol=1e-4), "mismatch vs reference"

    print("KERNEL_OK")
</pallas_src>

<mosaic_0001>
module attributes {stable_mosaic.version = 11 : i64} {
  func.func @attention_kernel(%arg0: i32, %arg1: memref<8x8x32xf32, #tpu.memory_space<vmem>>, %arg2: memref<32x32xf32, #tpu.memory_space<vmem>>, %arg3: memref<8x32xf32, #tpu.memory_space<vmem>>) attributes {dimension_semantics = [#tpu.dimension_semantics<parallel>], iteration_bounds = array<i64: 1>, scalar_prefetch = 0 : i64, scratch_operands = 0 : i64, tpu.core_type = #tpu.core_type<tc>, window_params = [{transform_indices = @transform_0, window_bounds = array<i64: 8, 8, 32>}, {pipeline_mode = #tpu.pipeline_mode<synchronous>, transform_indices = @transform_1, window_bounds = array<i64: 32, 32>}, {transform_indices = @transform_2, window_bounds = array<i64: 8, 32>}]} {
    %c0 = arith.constant 0 : index
    %c0_0 = arith.constant 0 : index
    %c0_1 = arith.constant 0 : index
    %0 = vector.load %arg1[%c0, %c0_0, %c0_1] : memref<8x8x32xf32, #tpu.memory_space<vmem>>, vector<8x8x32xf32>
    %c0_2 = arith.constant 0 : index
    %c0_3 = arith.constant 0 : index
    %1 = vector.load %arg2[%c0_2, %c0_3] : memref<32x32xf32, #tpu.memory_space<vmem>>, vector<32x32xf32>
    %cst = arith.constant dense<0.000000e+00> : vector<8x32xf32>
    %2 = vector.multi_reduction <add>, %0, %cst [1] : vector<8x8x32xf32> to vector<8x32xf32>
    %cst_4 = arith.constant 8.000000e+00 : f32
    %3 = vector.broadcast %cst_4 : f32 to vector<8x32xf32>
    %4 = arith.divf %2, %3 : vector<8x32xf32>
    %cst_5 = arith.constant dense<0.000000e+00> : vector<8x32xf32>
    %5 = tpu.matmul %4, %1, %cst_5 {dimension_numbers = #tpu.dot_dimension_numbers<[1], [0], [0], [1], [0, 0, 1, 1], [], []>} : vector<8x32xf32>, vector<32x32xf32>, vector<8x32xf32> -> vector<8x32xf32>
    %6 = math.tanh %5 : vector<8x32xf32>
    %7 = vector.shape_cast %6 : vector<8x32xf32> to vector<8x1x32xf32>
    %8 = vector.broadcast %7 : vector<8x1x32xf32> to vector<8x8x32xf32>
    %9 = arith.mulf %0, %8 : vector<8x8x32xf32>
    %cst_6 = arith.constant dense<0.000000e+00> : vector<8x8xf32>
    %10 = vector.multi_reduction <add>, %9, %cst_6 [2] : vector<8x8x32xf32> to vector<8x8xf32>
    %11 = arith.negf %10 : vector<8x8xf32>
    %12 = math.exp %11 : vector<8x8xf32>
    %cst_7 = arith.constant 1.000000e+00 : f32
    %13 = vector.broadcast %cst_7 : f32 to vector<8x8xf32>
    %14 = arith.addf %13, %12 : vector<8x8xf32>
    %15 = arith.divf %13, %14 : vector<8x8xf32>
    %16 = vector.shape_cast %15 : vector<8x8xf32> to vector<8x8x1xf32>
    %17 = vector.broadcast %16 : vector<8x8x1xf32> to vector<8x8x32xf32>
    %18 = arith.mulf %17, %0 : vector<8x8x32xf32>
    %cst_8 = arith.constant dense<0.000000e+00> : vector<8x32xf32>
    %19 = vector.multi_reduction <add>, %18, %cst_8 [1] : vector<8x8x32xf32> to vector<8x32xf32>
    %c0_9 = arith.constant 0 : index
    %c0_10 = arith.constant 0 : index
    %20 = vector.load %arg3[%c0_9, %c0_10] : memref<8x32xf32, #tpu.memory_space<vmem>>, vector<8x32xf32>
    tpu.vector_store %arg3[%c0_9, %c0_10], %19 {strides = array<i32>} : memref<8x32xf32, #tpu.memory_space<vmem>>, vector<8x32xf32>,
    return
  }
  func.func @transform_0(%arg0: i32) -> (i32, i32, i32) {
    %c0_i32 = arith.constant 0 : i32
    %c0_i32_0 = arith.constant 0 : i32
    %c0_i32_1 = arith.constant 0 : i32
    return %arg0, %c0_i32, %c0_i32_0 : i32, i32, i32
  }
  func.func @transform_1(%arg0: i32) -> (i32, i32) {
    %c0_i32 = arith.constant 0 : i32
    %c0_i32_0 = arith.constant 0 : i32
    %c0_i32_1 = arith.constant 0 : i32
    return %c0_i32, %c0_i32_0 : i32, i32
  }
  func.func @transform_2(%arg0: i32) -> (i32, i32) {
    %c0_i32 = arith.constant 0 : i32
    %c0_i32_0 = arith.constant 0 : i32
    return %arg0, %c0_i32 : i32, i32
  }
}

</mosaic_0001>

<llo_original>
// kernel: tpu_custom_call.1
$region0: #{tpu_custom_call.1}
  #allocation0 [shape = 'u32[]', space=smem, size = 0x4, offset = 0x4, fixed_abs, tag = 'smem constant byte address 0x4 - core index']
  #allocation1 [shape = 'u32[144,128]{1,0:T(1,128)}', space=vmem, size = 0x12000, scoped, tag = 'internal scratch']
  %s0 = inlined_call_operand.hbm [shape: f32[8,8,32], index: 0, kind: input, shape index: {}]
  %s1 = inlined_call_operand.hbm [shape: f32[32,32], index: 1, kind: input, shape index: {}]
  %s2 = inlined_call_operand.hbm [shape: f32[8,32], index: 2, kind: output, shape index: {}]
  %s3 = sld [smem:[#allocation0]]
  $region26: #{tpu_custom_call.1} parent=0
    _
  %s5 = ssub.s32 1, %s3
  %s6 = scalar_select 0, %s5, %s3
  $region1: #{tpu_custom_call.1} parent=0
    #allocation2 [shape = 'u8[32768]{0}', space=vmem, size = 0x8000, scoped, tag = 'input window, operand 0, single buffered']
    #allocation3 [shape = 's32[1]{0}', space=sflag, size = 0x4, scoped, tag = 'scoped memory for tpu_custom_call.1']
    #allocation4 [shape = 's32[1]{0}', space=sflag, size = 0x4, scoped, tag = 'scoped memory for tpu_custom_call.1']
    #allocation5 [shape = 'u8[16384]{0}', space=vmem, size = 0x4000, scoped, tag = 'input window, operand 1, single buffered']
    #allocation6 [shape = 's32[1]{0}', space=sflag, size = 0x4, scoped, tag = 'scoped memory for tpu_custom_call.1']
    #allocation7 [shape = 'u8[4096]{0}', space=vmem, size = 0x1000, scoped, tag = 'output window, operand 0, single buffered']
    %7 = vsyncpa [#allocation3], 0
    %8 = vsyncpa [#allocation6], 0
    %9 = vsyncpa [#allocation4], 0
    // Predicated region
    $region2: #{tpu_custom_call.1} parent=1 // pred_check
      _
    $region3: #{tpu_custom_call.1} parent=1 // pred_check_branch
      %11 = sbr.rel (0) target = $region5
    $region4: #{tpu_custom_call.1} parent=1 // pred_region
      %s13 = ssub.s32 1024, 1024
      %14 = vsyncadd [#allocation3], %s13
      %s15 = sshll.u32 [#allocation2], 4
      %s16 = int_to_ptr.vmem [resolvable:$true] %s15
      %21 = dma.hbm_to_vmem [thread:$0]  %s0, 1024, %s16, [#allocation3], 128, 128, 8
    $region5: #{tpu_custom_call.1} parent=1 // pred_fallthru
      _
    // Predicated region
    $region6: #{tpu_custom_call.1} parent=1 // pred_check
      _
    $region7: #{tpu_custom_call.1} parent=1 // pred_check_branch
      %23 = sbr.rel (0) target = $region9
    $region8: #{tpu_custom_call.1} parent=1 // pred_region
      %s25 = ssub.s32 512, 512
      %26 = vsyncadd [#allocation6], %s25
      %s27 = sshll.u32 [#allocation5], 4
      %s28 = int_to_ptr.vmem [resolvable:$true] %s27
      %33 = dma.hbm_to_vmem [thread:$0]  %s1, 512, %s28, [#allocation6], 128, 128, 8
    $region9: #{tpu_custom_call.1} parent=1 // pred_fallthru
      _
    // Predicated region
    $region10: #{tpu_custom_call.1} parent=1 // pred_check
      _
    $region11: #{tpu_custom_call.1} parent=1 // pred_check_branch
      %35 = sbr.rel (0) target = $region13
    $region12: #{tpu_custom_call.1} parent=1 // pred_region
      %36 = dma.done [#allocation3], 1024
    $region13: #{tpu_custom_call.1} parent=1 // pred_fallthru
      _
    // Predicated region
    $region14: #{tpu_custom_call.1} parent=1 // pred_check
      _
    $region15: #{tpu_custom_call.1} parent=1 // pred_check_branch
      %38 = sbr.rel (0) target = $region17
    $region16: #{tpu_custom_call.1} parent=1 // pred_region
      %39 = dma.done [#allocation6], 512
    $region17: #{tpu_custom_call.1} parent=1 // pred_fallthru
      _
    %v40 = vld [vmem:[#allocation2] sm:$0xff]
    %v41 = vld [vmem:[#allocation2 + $0x8] sm:$0xff]
    %v42 = vld [vmem:[#allocation2 + $0x10] sm:$0xff]
    %v43 = vld [vmem:[#allocation2 + $0x18] sm:$0xff]
    %v44 = vld [vmem:[#allocation2 + $0x20] sm:$0xff]
    %v45 = vld [vmem:[#allocation2 + $0x28] sm:$0xff]
    %v46 = vld [vmem:[#allocation2 + $0x30] sm:$0xff]
    %v47 = vld [vmem:[#allocation2 + $0x38] sm:$0xff]
    %v48 = vld [vmem:[#allocation5] sm:$0xff]
    %v49 = vld [vmem:[#allocation5 + $0x8] sm:$0xff]
    %v50 = vld [vmem:[#allocation5 + $0x10] sm:$0xff]
    %v51 = vld [vmem:[#allocation5 + $0x18] sm:$0xff]
    %vm52 = vcmask 261120
    %v53 = vsel %vm52, %v40, 0.0
    %v54 = vrot.slane %v53, 4
    %v55 = vadd.f32 %v53, %v54
    %v56 = vrot.slane %v55, 2
    %v57 = vadd.f32 %v55, %v56
    %v58 = vrot.slane %v57, 1
    %v59 = vadd.f32 %v57, %v58
    %v60 = vsel %vm52, %v41, 0.0
    %v61 = vrot.slane %v60, 4
    %v62 = vadd.f32 %v60, %v61
    %v63 = vrot.slane %v62, 2
    %v64 = vadd.f32 %v62, %v63
    %v65 = vrot.slane %v64, 1
    %v66 = vadd.f32 %v64, %v65
    %v67 = vsel %vm52, %v42, 0.0
    %v68 = vrot.slane %v67, 4
    %v69 = vadd.f32 %v67, %v68
    %v70 = vrot.slane %v69, 2
    %v71 = vadd.f32 %v69, %v70
    %v72 = vrot.slane %v71, 1
    %v73 = vadd.f32 %v71, %v72
    %v74 = vsel %vm52, %v43, 0.0
    %v75 = vrot.slane %v74, 4
    %v76 = vadd.f32 %v74, %v75
    %v77 = vrot.slane %v76, 2
    %v78 = vadd.f32 %v76, %v77
    %v79 = vrot.slane %v78, 1
    %v80 = vadd.f32 %v78, %v79
    %v81 = vsel %vm52, %v44, 0.0
    %v82 = vrot.slane %v81, 4
    %v83 = vadd.f32 %v81, %v82
    %v84 = vrot.slane %v83, 2
    %v85 = vadd.f32 %v83, %v84
    %v86 = vrot.slane %v85, 1
    %v87 = vadd.f32 %v85, %v86
    %v88 = vsel %vm52, %v45, 0.0
    %v89 = vrot.slane %v88, 4
    %v90 = vadd.f32 %v88, %v89
    %v91 = vrot.slane %v90, 2
    %v92 = vadd.f32 %v90, %v91
    %v93 = vrot.slane %v92, 1
    %v94 = vadd.f32 %v92, %v93
    %v95 = vsel %vm52, %v46, 0.0
    %v96 = vrot.slane %v95, 4
    %v97 = vadd.f32 %v95, %v96
    %v98 = vrot.slane %v97, 2
    %v99 = vadd.f32 %v97, %v98
    %v100 = vrot.slane %v99, 1
    %v101 = vadd.f32 %v99, %v100
    %v102 = vsel %vm52, %v47, 0.0
    %v103 = vrot.slane %v102, 4
    %v104 = vadd.f32 %v102, %v103
    %v105 = vrot.slane %v104, 2
    %v106 = vadd.f32 %v104, %v105
    %v107 = vrot.slane %v106, 1
    %v108 = vadd.f32 %v106, %v107
    %v109 = vrcp.pop 8.0
    %v110 = vmul.f32 %v59, %v109
    %v111 = vmul.f32 %v66, %v109
    %v112 = vmul.f32 %v73, %v109
    %v113 = vmul.f32 %v80, %v109
    %v114 = vmul.f32 %v87, %v109
    %v115 = vmul.f32 %v94, %v109
    %v116 = vmul.f32 %v101, %v109
    %v117 = vmul.f32 %v108, %v109
    %vm126 = vcmask 1041409
    %v127 = vsel %vm126, %v111, %v110
    %vm128 = vcmask 1042434
    %v129 = vsel %vm128, %v112, %v127
    %vm130 = vcmask 1043459
    %v131 = vsel %vm130, %v113, %v129
    %vm132 = vcmask 1044484
    %v133 = vsel %vm132, %v114, %v131
    %vm134 = vcmask 1045509
    %v135 = vsel %vm134, %v115, %v133
    %vm136 = vcmask 1046534
    %v137 = vsel %vm136, %v116, %v135
    %vm138 = vcmask 1047559
    %v139 = vsel %vm138, %v117, %v137
    %v140 = vsel %vm52, %v139, 0
    %142 = vmatprep.subr.mxu0 0.0
    %143 = vmatpush1.msra.mxu0 0.0
    %144 = vmatprep.subr.mxu0 0.0
    %145 = vmatpush1.msra.mxu0 0.0
    %146 = vmatprep.subr.mxu0 0.0
    %147 = vmatpush1.msra.mxu0 0.0
    %148 = vmatprep.subr.mxu0 0.0
    %149 = vmatpush1.msra.mxu0 0.0
    %150 = vmatprep.subr.mxu0 0.0
    %151 = vmatpush1.msra.mxu0 0.0
    %152 = vmatprep.subr.mxu0 0.0
    %153 = vmatpush1.msra.mxu0 0.0
    %154 = vmatprep.subr.mxu0 0.0
    %155 = vmatpush1.msra.mxu0 0.0
    %156 = vmatprep.subr.mxu0 0.0
    %157 = vmatpush1.msra.mxu0 0.0
    %158 = vmatprep.subr.mxu0 0.0
    %159 = vmatpush1.msra.mxu0 0.0
    %160 = vmatprep.subr.mxu0 0.0
    %161 = vmatpush1.msra.mxu0 0.0
    %162 = vmatprep.subr.mxu0 0.0
    %163 = vmatpush1.msra.mxu0 0.0
    %164 = vmatprep.subr.mxu0 0.0
    %165 = vmatpush1.msra.mxu0 0.0
    %166 = vmatprep.subr.mxu0 0.0
    %167 = vmatpush1.msra.mxu0 %v51
    %168 = vmatprep.subr.mxu0 0.0
    %169 = vmatpush1.msra.mxu0 %v50
    %170 = vmatprep.subr.mxu0 0.0
    %171 = vmatpush1.msra.mxu0 %v49
    %172 = vmatprep.subr.mxu0 0.0
    %173 = vmatpush1.msra.mxu0 %v48
    %174 = vmatprep.subr.mxu0 0.0
    %175 = vmatpush2.msra.mxu0 0.0
    %176 = vmatprep.subr.mxu0 0.0
    %177 = vmatpush2.msra.mxu0 0.0
    %178 = vmatprep.subr.mxu0 0.0
    %179 = vmatpush2.msra.mxu0 0.0
    %180 = vmatprep.subr.mxu0 0.0
    %181 = vmatpush2.msra.mxu0 0.0
    %182 = vmatprep.subr.mxu0 0.0
    %183 = vmatpush2.msra.mxu0 0.0
    %184 = vmatprep.subr.mxu0 0.0
    %185 = vmatpush2.msra.mxu0 0.0
    %186 = vmatprep.subr.mxu0 0.0
    %187 = vmatpush2.msra.mxu0 0.0
    %188 = vmatprep.subr.mxu0 0.0
    %189 = vmatpush2.msra.mxu0 0.0
    %190 = vmatprep.subr.mxu0 0.0
    %191 = vmatpush2.msra.mxu0 0.0
    %192 = vmatprep.subr.mxu0 0.0
    %193 = vmatpush2.msra.mxu0 0.0
    %194 = vmatprep.subr.mxu0 0.0
    %195 = vmatpush2.msra.mxu0 0.0
    %196 = vmatprep.subr.mxu0 0.0
    %197 = vmatpush2.msra.mxu0 0.0
    %198 = vmatprep.subr.mxu0 0.0
    %199 = vmatpush2.msra.mxu0 0.0
    %200 = vmatprep.subr.mxu0 0.0
    %201 = vmatpush2.msra.mxu0 0.0
    %202 = vmatprep.subr.mxu0 0.0
    %203 = vmatpush2.msra.mxu0 0.0
    %204 = vmatprep.subr.mxu0 0.0
    %205 = vmatpush2.msra.mxu0 0.0
    %206 = vmatprep.mubr.f32.mxu0 0.0
    %207 = vmatmul.mubr.f32.gmra.mxu0 %v140
    %v208 = vpop.f32.mrf.mxu0
    %v209 = vadd.f32 0.0, %v208
    %v210 = vpop.f32.mrf.mxu0
    %211 = vdwg.mxu0
    %v212 = vtanh.pop %v209
    %v214 = vcombine.high %v212, %v212
    %v216 = vunpack.c.l.s4 1966171168
    %v217 = vunpack.c.0.s8 %v216
    %v218 = vlaneseq
    %v219 = vshrl.u32 %v218, 7
    %v220 = vsub.s32 %v217, %v219
    %v221 = vrot.slane %v212, %v220
    %v223 = vunpack.c.l.s4 1966171168
    %v224 = vunpack.c.0.s8 %v223
    %v225 = vlaneseq
    %v226 = vshrl.u32 %v225, 7
    %v227 = vsub.s32 %v224, %v226
    %v228 = vrot.slane %v214, %v227
    %v229 = vcombine.high %v221, %v221
    %v230 = vcombine.high %v228, %v228
    %v232 = vunpack.c.l.s4 1966171168
    %v233 = vunpack.c.0.s8 %v232
    %v234 = vlaneseq
    %v235 = vshrl.u32 %v234, 7
    %v236 = vsub.s32 %v233, %v235
    %v237 = vrot.slane %v221, %v236
    %v239 = vunpack.c.l.s4 1966171168
    %v240 = vunpack.c.0.s8 %v239
    %v241 = vlaneseq
    %v242 = vshrl.u32 %v241, 7
    %v243 = vsub.s32 %v240, %v242
    %v244 = vrot.slane %v228, %v243
    %v246 = vunpack.c.l.s4 1966171168
    %v247 = vunpack.c.0.s8 %v246
    %v248 = vlaneseq
    %v249 = vshrl.u32 %v248, 7
    %v250 = vsub.s32 %v247, %v249
    %v251 = vrot.slane %v229, %v250
    %v253 = vunpack.c.l.s4 1966171168
    %v254 = vunpack.c.0.s8 %v253
    %v255 = vlaneseq
    %v256 = vshrl.u32 %v255, 7
    %v257 = vsub.s32 %v254, %v256
    %v258 = vrot.slane %v230, %v257
    %v259 = vcombine.high %v237, %v237
    %v260 = vcombine.high %v244, %v244
    %v261 = vcombine.high %v251, %v251
    %v262 = vcombine.high %v258, %v258
    %v263 = vlaneseq
    %v264 = vshrl.u32 %v263, 7
    %v265 = vsub.s32 0, %v264
    %v266 = vrot.slane %v237, %v265
    %v267 = vlaneseq
    %v268 = vshrl.u32 %v267, 7
    %v269 = vsub.s32 0, %v268
    %v270 = vrot.slane %v251, %v269
    %v271 = vlaneseq
    %v272 = vshrl.u32 %v271, 7
    %v273 = vsub.s32 0, %v272
    %v274 = vrot.slane %v259, %v273
    %v275 = vlaneseq
    %v276 = vshrl.u32 %v275, 7
    %v277 = vsub.s32 0, %v276
    %v278 = vrot.slane %v261, %v277
    %v279 = vlaneseq
    %v280 = vshrl.u32 %v279, 7
    %v281 = vsub.s32 0, %v280
    %v282 = vrot.slane %v244, %v281
    %v283 = vlaneseq
    %v284 = vshrl.u32 %v283, 7
    %v285 = vsub.s32 0, %v284
    %v286 = vrot.slane %v258, %v285
    %v287 = vlaneseq
    %v288 = vshrl.u32 %v287, 7
    %v289 = vsub.s32 0, %v288
    %v290 = vrot.slane %v260, %v289
    %v291 = vlaneseq
    %v292 = vshrl.u32 %v291, 7
    %v293 = vsub.s32 0, %v292
    %v294 = vrot.slane %v262, %v293
    %v303 = vmul.f32 %v40, %v266
    %v304 = vmul.f32 %v41, %v270
    %v305 = vmul.f32 %v42, %v274
    %v306 = vmul.f32 %v43, %v278
    %v307 = vmul.f32 %v44, %v282
    %v308 = vmul.f32 %v45, %v286
    %v309 = vmul.f32 %v46, %v290
    %v310 = vmul.f32 %v47, %v294
    %v311 = vsel %vm52, %v303, 0.0
    %312 = vadd.xlane.f32.xlu0 %v311
    %v313 = vpop.xlane.xlu0 %312
    %v314 = vsel %vm52, %v304, 0.0
    %315 = vadd.xlane.f32.xlu0 %v314
    %v316 = vpop.xlane.xlu0 %315
    %v317 = vsel %vm52, %v305, 0.0
    %318 = vadd.xlane.f32.xlu0 %v317
    %v319 = vpop.xlane.xlu0 %318
    %v320 = vsel %vm52, %v306, 0.0
    %321 = vadd.xlane.f32.xlu0 %v320
    %v322 = vpop.xlane.xlu0 %321
    %v323 = vsel %vm52, %v307, 0.0
    %324 = vadd.xlane.f32.xlu0 %v323
    %v325 = vpop.xlane.xlu0 %324
    %v326 = vsel %vm52, %v308, 0.0
    %327 = vadd.xlane.f32.xlu0 %v326
    %v328 = vpop.xlane.xlu0 %327
    %v329 = vsel %vm52, %v309, 0.0
    %330 = vadd.xlane.f32.xlu0 %v329
    %v331 = vpop.xlane.xlu0 %330
    %v332 = vsel %vm52, %v310, 0.0
    %333 = vadd.xlane.f32.xlu0 %v332
    %v334 = vpop.xlane.xlu0 %333
    %v335 = vxor.u32 %v313, 2147483648
    %v336 = vxor.u32 %v316, 2147483648
    %v337 = vxor.u32 %v319, 2147483648
    %v338 = vxor.u32 %v322, 2147483648
    %v339 = vxor.u32 %v325, 2147483648
    %v340 = vxor.u32 %v328, 2147483648
    %v341 = vxor.u32 %v331, 2147483648
    %v342 = vxor.u32 %v334, 2147483648
    %v343 = vmul.f32 %v335, 1.442695
    %v344 = vpow.pop %v343
    %v345 = vmul.f32 %v336, 1.442695
    %v346 = vpow.pop %v345
    %v347 = vmul.f32 %v337, 1.442695
    %v348 = vpow.pop %v347
    %v349 = vmul.f32 %v338, 1.442695
    %v350 = vpow.pop %v349
    %v351 = vmul.f32 %v339, 1.442695
    %v352 = vpow.pop %v351
    %v353 = vmul.f32 %v340, 1.442695
    %v354 = vpow.pop %v353
    %v355 = vmul.f32 %v341, 1.442695
    %v356 = vpow.pop %v355
    %v357 = vmul.f32 %v342, 1.442695
    %v358 = vpow.pop %v357
    %v359 = vadd.f32 %v344, 1.0
    %v360 = vadd.f32 %v346, 1.0
    %v361 = vadd.f32 %v348, 1.0
    %v362 = vadd.f32 %v350, 1.0
    %v363 = vadd.f32 %v352, 1.0
    %v364 = vadd.f32 %v354, 1.0
    %v365 = vadd.f32 %v356, 1.0
    %v366 = vadd.f32 %v358, 1.0
    %v367 = vrcp.pop %v359
    %v368 = vmul.f32 1.0, %v367
    %v369 = vrcp.pop %v360
    %v370 = vmul.f32 1.0, %v369
    %v371 = vrcp.pop %v361
    %v372 = vmul.f32 1.0, %v371
    %v373 = vrcp.pop %v362
    %v374 = vmul.f32 1.0, %v373
    %v375 = vrcp.pop %v363
    %v376 = vmul.f32 1.0, %v375
    %v377 = vrcp.pop %v364
    %v378 = vmul.f32 1.0, %v377
    %v379 = vrcp.pop %v365
    %v380 = vmul.f32 1.0, %v379
    %v381 = vrcp.pop %v366
    %v382 = vmul.f32 1.0, %v381
    %v383 = vmul.f32 %v368, %v40
    %v384 = vmul.f32 %v370, %v41
    %v385 = vmul.f32 %v372, %v42
    %v386 = vmul.f32 %v374, %v43
    %v387 = vmul.f32 %v376, %v44
    %v388 = vmul.f32 %v378, %v45
    %v389 = vmul.f32 %v380, %v46
    %v390 = vmul.f32 %v382, %v47
    %v391 = vsel %vm52, %v383, 0.0
    %v392 = vrot.slane %v391, 4
    %v393 = vadd.f32 %v391, %v392
    %v394 = vrot.slane %v393, 2
    %v395 = vadd.f32 %v393, %v394
    %v396 = vrot.slane %v395, 1
    %v397 = vadd.f32 %v395, %v396
    %v398 = vsel %vm52, %v384, 0.0
    %v399 = vrot.slane %v398, 4
    %v400 = vadd.f32 %v398, %v399
    %v401 = vrot.slane %v400, 2
    %v402 = vadd.f32 %v400, %v401
    %v403 = vrot.slane %v402, 1
    %v404 = vadd.f32 %v402, %v403
    %v405 = vsel %vm52, %v385, 0.0
    %v406 = vrot.slane %v405, 4
    %v407 = vadd.f32 %v405, %v406
    %v408 = vrot.slane %v407, 2
    %v409 = vadd.f32 %v407, %v408
    %v410 = vrot.slane %v409, 1
    %v411 = vadd.f32 %v409, %v410
    %v412 = vsel %vm52, %v386, 0.0
    %v413 = vrot.slane %v412, 4
    %v414 = vadd.f32 %v412, %v413
    %v415 = vrot.slane %v414, 2
    %v416 = vadd.f32 %v414, %v415
    %v417 = vrot.slane %v416, 1
    %v418 = vadd.f32 %v416, %v417
    %v419 = vsel %vm52, %v387, 0.0
    %v420 = vrot.slane %v419, 4
    %v421 = vadd.f32 %v419, %v420
    %v422 = vrot.slane %v421, 2
    %v423 = vadd.f32 %v421, %v422
    %v424 = vrot.slane %v423, 1
    %v425 = vadd.f32 %v423, %v424
    %v426 = vsel %vm52, %v388, 0.0
    %v427 = vrot.slane %v426, 4
    %v428 = vadd.f32 %v426, %v427
    %v429 = vrot.slane %v428, 2
    %v430 = vadd.f32 %v428, %v429
    %v431 = vrot.slane %v430, 1
    %v432 = vadd.f32 %v430, %v431
    %v433 = vsel %vm52, %v389, 0.0
    %v434 = vrot.slane %v433, 4
    %v435 = vadd.f32 %v433, %v434
    %v436 = vrot.slane %v435, 2
    %v437 = vadd.f32 %v435, %v436
    %v438 = vrot.slane %v437, 1
    %v439 = vadd.f32 %v437, %v438
    %v440 = vsel %vm52, %v390, 0.0
    %v441 = vrot.slane %v440, 4
    %v442 = vadd.f32 %v440, %v441
    %v443 = vrot.slane %v442, 2
    %v444 = vadd.f32 %v442, %v443
    %v445 = vrot.slane %v444, 1
    %v446 = vadd.f32 %v444, %v445
    %v455 = vsel %vm126, %v404, %v397
    %v456 = vsel %vm128, %v411, %v455
    %v457 = vsel %vm130, %v418, %v456
    %v458 = vsel %vm132, %v425, %v457
    %v459 = vsel %vm134, %v432, %v458
    %v460 = vsel %vm136, %v439, %v459
    %v461 = vsel %vm138, %v446, %v460
    %463 = vst.msk [vmem:[#allocation7] sm:$0xff] %vm52, %v461
    // Predicated region
    $region18: #{tpu_custom_call.1} parent=1 // pred_check
      _
    $region19: #{tpu_custom_call.1} parent=1 // pred_check_branch
      %465 = sbr.rel (0) target = $region21
    $region20: #{tpu_custom_call.1} parent=1 // pred_region
      %s467 = ssub.s32 128, 128
      %468 = vsyncadd [#allocation4], %s467
      %s470 = sshll.u32 [#allocation7], 4
      %s471 = int_to_ptr.vmem [resolvable:$true] %s470
      %473 = dma.vmem_to_hbm [thread:$0]  %s471, 128, %s2, [#allocation4]
    $region21: #{tpu_custom_call.1} parent=1 // pred_fallthru
      _
    // Predicated region
    $region22: #{tpu_custom_call.1} parent=1 // pred_check
      _
    $region23: #{tpu_custom_call.1} parent=1 // pred_check_branch
      %475 = sbr.rel (0) target = $region25
    $region24: #{tpu_custom_call.1} parent=1 // pred_region
      %476 = dma.done [#allocation4], 128
    $region25: #{tpu_custom_call.1} parent=1 // pred_fallthru
      _
    %477 = vsyncpa [#allocation3], 1
    %478 = vsyncpa [#allocation6], 1
    %479 = vsyncpa [#allocation4], 1

</llo_original>
